<compile_context>
chip_gen: v6e
topology: v6e:2x2x1
jax: 0.10.0
libtpu: 0.0.40
codegen_flags: <defaults>
</compile_context>

<pallas_src>
import functools

import numpy as np
import jax
import jax.numpy as jnp
from jax import lax
from jax.experimental import pallas as pl
from jax.experimental.pallas import tpu as pltpu


_OUT_LANES = 128      # lane-dense per-cluster output block (unmasked vst)
_ROW_TILE = 256       # target rows per panel = MXU contraction width on v6e/v7x


def _round_up(a, b):
    return (a + b - 1) // b * b


def _vicreg_panel_kernel(pc_ref, pfirst_ref, plast_ref, cnt_ref,   # scalar prefetch (SMEM)
                         xc_ref,                                   # (TM, D_pad) centered rows
                         out_ref,                                  # (1, 128) per-cluster block
                         m2_ref, ssq_ref,                          # VMEM scratch accumulators
                         *, d_true):
    p = pl.program_id(0)

    # Reset the per-cluster accumulators on the cluster's first panel.
    @pl.when(pfirst_ref[p] == 1)
    def _():
        m2_ref[...] = jnp.zeros_like(m2_ref)
        ssq_ref[...] = jnp.zeros_like(ssq_ref)

    # Accumulate this panel.  Rows are pre-centered by their cluster mean and
    # pad rows/columns are exactly zero, so no mask multiply is needed.
    xc = xc_ref[...]                                            # (TM, D_pad) f32
    ssq_ref[...] += jnp.sum(xc * xc, axis=0, keepdims=True)     # exact f32 column ssq
    cb = xc.astype(jnp.bfloat16)                                # bf16 MXU operands
    # Contracting dim 0 of both operands == c^T c; lowers as a transposed-LHS
    # matmul (no explicit XLU transpose of the panel).
    m2_ref[...] += lax.dot_general(cb, cb, (((0,), (0,)), ((), ())),
                                   preferred_element_type=jnp.float32)

    # Finalize on the cluster's last panel and write its covariance loss.
    @pl.when(plast_ref[p] == 1)
    def _():
        k = pc_ref[p]
        nf = cnt_ref[k].astype(jnp.float32)
        nm1 = jnp.maximum(nf - 1.0, 1.0)                        # unbiased divisor (ddof=1)

        ssq = ssq_ref[...]                                      # (1, D_pad)
        sv = 1.0 / (ssq / nm1 + 1e-4)                           # inverse variance = inv_std^2
        m2 = m2_ref[...]                                        # (D_pad, D_pad)
        # TODO(synk): for very large D on v7x (64 MiB VMEM) column-panel this
        # (D_pad, D_pad) block instead of holding M2 and M2*M2 monolithically.

        # |G|_F^2 with G = diag(s) M2 diag(s):  sum_ij M2_ij^2 sv_i sv_j.
        w = m2 * m2
        sv8 = jnp.broadcast_to(sv, (8, sv.shape[1]))            # keep MXU LHS >= 8 sublanes
        u = lax.dot_general(sv8, w, (((1,), (0,)), ((), ())),
                            preferred_element_type=jnp.float32)  # (8, D_pad)
        frob = jnp.sum(u[0:1, :] * sv)

        gdiag = ssq * sv                                        # diag(G) up to bf16 rounding
        diag_sq = jnp.sum(gdiag * gdiag)

        off_sq = jnp.maximum(frob - diag_sq, 0.0)               # clamp cancellation residue
        loss = off_sq / (nm1 * nm1 * d_true)
        val = jnp.where(nf > 1.5, loss, 0.0)                    # clusters with <=1 member: 0
        out_ref[...] = jnp.broadcast_to(val, out_ref.shape).astype(jnp.float32)


@functools.partial(jax.jit, static_argnums=(2,))
def vicreg_cluster_loss(x, labels, num_clusters):
    """Sum of VICRegSingle covariance losses over clusters 0..num_clusters-1.

    `labels` maps each row to a cluster id; rows whose label falls outside
    [0, num_clusters) (e.g. HDBSCAN noise) are ignored.
    """
    n, d = x.shape
    if n <= 1 or num_clusters < 1:                 # VICRegCluster guard: batch > 1 row
        return jnp.zeros((), jnp.float32)

    k_num = int(num_clusters)
    d_pad = _round_up(max(d, 128), 128)            # lane-align D (zero cols are inert)
    tm = max(8, min(_ROW_TILE, _round_up(n, 8)))   # row-panel size (multiple of 8)

    xf = x.astype(jnp.float32)
    has_nan = jnp.isnan(xf).any()                  # explicit guard (torch.isnan(x).any())

    lab = labels.astype(jnp.int32).reshape(n)
    valid = (lab >= 0) & (lab < k_num)
    lab_c = jnp.where(valid, lab, k_num)           # invalid rows -> bucket k_num (dropped)

    # Per-cluster counts / means via segment scatter-adds (no K factor).
    counts = jnp.zeros((k_num + 1,), jnp.float32).at[lab_c].add(1.0)[:k_num]
    sums = jnp.zeros((k_num + 1, d), jnp.float32).at[lab_c].add(xf)[:k_num]
    means = sums / jnp.maximum(counts, 1.0)[:, None]
    counts_i32 = counts.astype(jnp.int32)

    # Row layout: rows sorted by cluster, each cluster zero-padded to a multiple
    # of tm rows so every panel is cluster-pure; >=1 panel per cluster so every
    # output block is written exactly once (empty clusters write 0, no garbage).
    panels_k = jnp.maximum((counts_i32 + tm - 1) // tm, 1)              # (K,)
    panel_start = jnp.concatenate(
        [jnp.zeros((1,), jnp.int32), jnp.cumsum(panels_k)[:-1].astype(jnp.int32)])
    row_start = panel_start * tm
    n_panels = n // tm + k_num                      # static bound on sum(panels_k)
    n_rows = n_panels * tm

    order = jnp.argsort(lab_c)                      # stable: clusters stay contiguous
    sorted_lab = lab_c[order]
    lab_clip = jnp.clip(sorted_lab, 0, k_num - 1)
    cum_counts = jnp.concatenate(
        [jnp.zeros((1,), jnp.int32), jnp.cumsum(counts_i32).astype(jnp.int32)])
    rank = jnp.arange(n, dtype=jnp.int32) - cum_counts[lab_clip]
    dest = jnp.where(sorted_lab < k_num, row_start[lab_clip] + rank, n_rows)  # OOB -> dropped

    # Center rows by their cluster mean here (fuses with the gather); pad rows
    # and pad columns stay exactly zero, so the kernel needs no masks or means.
    xc_sorted = xf[order] - means[lab_clip]
    xc_pad = jnp.pad(xc_sorted, ((0, 0), (0, d_pad - d)))
    x_aligned = jnp.zeros((n_rows, d_pad), jnp.float32).at[dest].set(xc_pad, mode="drop")

    # Per-panel metadata (scalar-prefetched into SMEM).
    p_idx = jnp.arange(n_panels, dtype=jnp.int32)
    pcluster = jnp.clip(jnp.searchsorted(panel_start, p_idx, side="right") - 1,
                        0, k_num - 1).astype(jnp.int32)
    panel_end = panel_start + panels_k
    pfirst = (p_idx == panel_start[pcluster]).astype(jnp.int32)
    plast = (p_idx == panel_end[pcluster] - 1).astype(jnp.int32)

    # Generation-aware VMEM ceiling: actual blocks/scratch/temps, capped at ~85%
    # of physical VMEM (64 MiB on v7x, 128 MiB on v5e/v6e).
    est = (2 * tm * d_pad * 4        # double-buffered input panels
           + tm * d_pad * 2          # bf16 operand temp
           + 2 * d_pad * d_pad * 4   # M2 scratch + M2*M2 temp
           + 8 * d_pad * 4 + (1 << 20))
    try:
        cap = int(pltpu.get_tpu_info().vmem_capacity_bytes)
    except Exception:
        cap = 64 * 1024 * 1024
    vmem_limit = int(min(max(2 * est, 16 * 1024 * 1024), int(0.85 * cap)))

    kernel = functools.partial(_vicreg_panel_kernel, d_true=float(d))

    out = pl.pallas_call(
        kernel,
        out_shape=jax.ShapeDtypeStruct((1, k_num * _OUT_LANES), jnp.float32),
        grid_spec=pltpu.PrefetchScalarGridSpec(
            num_scalar_prefetch=4,                 # pcluster, pfirst, plast, counts -> SMEM
            grid=(n_panels,),
            in_specs=[
                pl.BlockSpec((tm, d_pad), lambda p, pc, pf, pq, cn: (p, 0)),
            ],
            out_specs=pl.BlockSpec((1, _OUT_LANES),
                                   lambda p, pc, pf, pq, cn: (0, pc[p])),
            scratch_shapes=[pltpu.VMEM((d_pad, d_pad), jnp.float32),   # M2 accumulator
                            pltpu.VMEM((1, d_pad), jnp.float32)],      # ssq accumulator
        ),
        compiler_params=pltpu.CompilerParams(
            # Accumulators carry across a cluster's panels -> sequential axis.
            dimension_semantics=("arbitrary",),
            vmem_limit_bytes=vmem_limit),
    )(pcluster, pfirst, plast, counts_i32, x_aligned)

    per_cluster = out.reshape(k_num, _OUT_LANES)[:, 0]
    total = jnp.sum(per_cluster)
    return jnp.where(has_nan, jnp.float32(0.0), total)


if __name__ == "__main__":
    key = jax.random.PRNGKey(0)
    N, D, K = 16, 32, 3
    x = jax.random.normal(key, (N, D), dtype=jnp.float32)

    # TODO(synk): HDBSCAN().fit_predict has no Pallas/JAX equivalent (host-side
    # density clustering); deterministic surrogate labels stand in for it here.
    labels = jnp.argmax(x[:, :K], axis=1).astype(jnp.int32)

    loss = jax.block_until_ready(vicreg_cluster_loss(x, labels, K))

    # Pure-JAX f32 reference (mirrors the PyTorch module semantics).
    def _single_ref(xc):
        std = jnp.sqrt(xc.var(axis=0, ddof=1) + 1e-4)
        z = (xc - xc.mean(axis=0)) / std
        cov = z.T @ z / (xc.shape[0] - 1)
        off = cov - jnp.diag(jnp.diag(cov))
        return jnp.sum(off ** 2) / xc.shape[1]

    labels_np = np.asarray(labels)
    ref = 0.0
    for lbl in sorted(set(labels_np.tolist())):
        xc = x[labels_np == lbl]
        if xc.shape[0] > 1:
            ref += float(_single_ref(xc))

    # bf16 MXU operands (f32 accumulation) => up to ~1e-2 relative difference
    # from the all-f32 reference on these tiny clusters.
    assert abs(float(loss) - ref) <= 2e-2 * max(1.0, abs(ref)), (float(loss), ref)

    # Guard paths: NaN input and single-row input both return 0.
    x_nan = x.at[3, 5].set(jnp.nan)
    loss_nan = jax.block_until_ready(vicreg_cluster_loss(x_nan, labels, K))
    assert float(loss_nan) == 0.0, float(loss_nan)
    loss_single = jax.block_until_ready(vicreg_cluster_loss(x[:1], labels[:1], K))
    assert float(loss_single) == 0.0, float(loss_single)

    print("KERNEL_OK")
</pallas_src>

<mosaic_0001>
module attributes {stable_mosaic.version = 11 : i64} {
  func.func private @main(%arg0: i32) attributes {dimension_semantics = [#tpu.dimension_semantics<core_parallel>], iteration_bounds = array<i64: 2>, tpu.core_type = #tpu.core_type<sc_scalar_subcore>, window_params = []} {
    return
  }
}

module attributes {stable_mosaic.version = 11 : i64} {
  func.func private @main(%arg0: i32) attributes {dimension_semantics = [#tpu.dimension_semantics<core_parallel>], iteration_bounds = array<i64: 2>, tpu.core_type = #tpu.core_type<sc_scalar_subcore>, window_params = []} {
    return
  }
}

module attributes {stable_mosaic.version = 11 : i64} {
  func.func @_vicreg_panel_kernel(%arg0: i32, %arg1: memref<4xi32, #tpu.memory_space<smem>>, %arg2: memref<4xi32, #tpu.memory_space<smem>>, %arg3: memref<4xi32, #tpu.memory_space<smem>>, %arg4: memref<3xi32, #tpu.memory_space<smem>>, %arg5: memref<16x128xf32, #tpu.memory_space<vmem>>, %arg6: memref<1x128xf32, #tpu.memory_space<vmem>>, %arg7: memref<128x128xf32, #tpu.memory_space<vmem>>, %arg8: memref<1x128xf32, #tpu.memory_space<vmem>>) attributes {dimension_semantics = [#tpu.dimension_semantics<arbitrary>], iteration_bounds = array<i64: 4>, scalar_prefetch = 4 : i64, scratch_operands = 2 : i64, tpu.core_type = #tpu.core_type<tc>, window_params = [{transform_indices = @transform_0, window_bounds = array<i64: 16, 128>}, {transform_indices = @transform_1, window_bounds = array<i64: 1, 128>}]} {
    %0 = arith.index_cast %arg0 : i32 to index
    %1 = memref.load %arg2[%0] : memref<4xi32, #tpu.memory_space<smem>>
    %c1_i32 = arith.constant 1 : i32
    %2 = arith.cmpi eq, %1, %c1_i32 : i32
    %3 = arith.extui %2 : i1 to i32
    %c0_i32 = arith.constant 0 : i32
    %4 = arith.cmpi ne, %3, %c0_i32 : i32
    scf.if %4 {
      %cst_12 = arith.constant 0.000000e+00 : f32
      %22 = vector.broadcast %cst_12 : f32 to vector<128x128xf32>
      %c0_13 = arith.constant 0 : index
      %c0_14 = arith.constant 0 : index
      %23 = vector.load %arg7[%c0_13, %c0_14] : memref<128x128xf32, #tpu.memory_space<vmem>>, vector<128x128xf32>
      tpu.vector_store %arg7[%c0_13, %c0_14], %22 {strides = array<i32>} : memref<128x128xf32, #tpu.memory_space<vmem>>, vector<128x128xf32>,
      %cst_15 = arith.constant 0.000000e+00 : f32
      %24 = vector.broadcast %cst_15 : f32 to vector<1x128xf32>
      %c0_16 = arith.constant 0 : index
      %c0_17 = arith.constant 0 : index
      %25 = vector.load %arg8[%c0_16, %c0_17] : memref<1x128xf32, #tpu.memory_space<vmem>>, vector<1x128xf32>
      tpu.vector_store %arg8[%c0_16, %c0_17], %24 {strides = array<i32>} : memref<1x128xf32, #tpu.memory_space<vmem>>, vector<1x128xf32>,
    } else {
    }
    %c0 = arith.constant 0 : index
    %c0_0 = arith.constant 0 : index
    %5 = vector.load %arg5[%c0, %c0_0] : memref<16x128xf32, #tpu.memory_space<vmem>>, vector<16x128xf32>
    %c0_1 = arith.constant 0 : index
    %c0_2 = arith.constant 0 : index
    %6 = vector.load %arg8[%c0_1, %c0_2] : memref<1x128xf32, #tpu.memory_space<vmem>>, vector<1x128xf32>
    %7 = arith.mulf %5, %5 : vector<16x128xf32>
    %cst = arith.constant dense<0.000000e+00> : vector<128xf32>
    %8 = vector.multi_reduction <add>, %7, %cst [0] : vector<16x128xf32> to vector<128xf32>
    %9 = vector.shape_cast %8 : vector<128xf32> to vector<1x128xf32>
    %10 = arith.addf %6, %9 : vector<1x128xf32>
    %c0_3 = arith.constant 0 : index
    %c0_4 = arith.constant 0 : index
    %11 = vector.load %arg8[%c0_3, %c0_4] : memref<1x128xf32, #tpu.memory_space<vmem>>, vector<1x128xf32>
    tpu.vector_store %arg8[%c0_3, %c0_4], %10 {strides = array<i32>} : memref<1x128xf32, #tpu.memory_space<vmem>>, vector<1x128xf32>,
    %12 = arith.truncf %5 : vector<16x128xf32> to vector<16x128xbf16>
    %c0_5 = arith.constant 0 : index
    %c0_6 = arith.constant 0 : index
    %13 = vector.load %arg7[%c0_5, %c0_6] : memref<128x128xf32, #tpu.memory_space<vmem>>, vector<128x128xf32>
    %cst_7 = arith.constant dense<0.000000e+00> : vector<128x128xf32>
    %14 = tpu.matmul %12, %12, %cst_7 {dimension_numbers = #tpu.dot_dimension_numbers<[0], [0], [1], [1], [0, 1, 1, 1], [], []>} : vector<16x128xbf16>, vector<16x128xbf16>, vector<128x128xf32> -> vector<128x128xf32>
    %15 = arith.addf %13, %14 : vector<128x128xf32>
    %c0_8 = arith.constant 0 : index
    %c0_9 = arith.constant 0 : index
    %16 = vector.load %arg7[%c0_8, %c0_9] : memref<128x128xf32, #tpu.memory_space<vmem>>, vector<128x128xf32>
    tpu.vector_store %arg7[%c0_8, %c0_9], %15 {strides = array<i32>} : memref<128x128xf32, #tpu.memory_space<vmem>>, vector<128x128xf32>,
    %17 = arith.index_cast %arg0 : i32 to index
    %18 = memref.load %arg3[%17] : memref<4xi32, #tpu.memory_space<smem>>
    %c1_i32_10 = arith.constant 1 : i32
    %19 = arith.cmpi eq, %18, %c1_i32_10 : i32
    %20 = arith.extui %19 : i1 to i32
    %c0_i32_11 = arith.constant 0 : i32
    %21 = arith.cmpi ne, %20, %c0_i32_11 : i32
    scf.if %21 {
      %22 = arith.index_cast %arg0 : i32 to index
      %23 = memref.load %arg1[%22] : memref<4xi32, #tpu.memory_space<smem>>
      %24 = arith.index_cast %23 : i32 to index
      %25 = memref.load %arg4[%24] : memref<3xi32, #tpu.memory_space<smem>>
      %26 = arith.sitofp %25 : i32 to f32
      %cst_12 = arith.constant 1.000000e+00 : f32
      %27 = arith.subf %26, %cst_12 : f32
      %cst_13 = arith.constant 1.000000e+00 : f32
      %28 = arith.maximumf %27, %cst_13 : f32
      %c0_14 = arith.constant 0 : index
      %c0_15 = arith.constant 0 : index
      %29 = vector.load %arg8[%c0_14, %c0_15] : memref<1x128xf32, #tpu.memory_space<vmem>>, vector<1x128xf32>
      %30 = vector.broadcast %28 : f32 to vector<1x128xf32>
      %31 = arith.divf %29, %30 : vector<1x128xf32>
      %cst_16 = arith.constant 9.99999974E-5 : f32
      %32 = vector.broadcast %cst_16 : f32 to vector<1x128xf32>
      %33 = arith.addf %31, %32 : vector<1x128xf32>
      %cst_17 = arith.constant 1.000000e+00 : f32
      %34 = vector.broadcast %cst_17 : f32 to vector<1x128xf32>
      %35 = arith.divf %34, %33 : vector<1x128xf32>
      %c0_18 = arith.constant 0 : index
      %c0_19 = arith.constant 0 : index
      %36 = vector.load %arg7[%c0_18, %c0_19] : memref<128x128xf32, #tpu.memory_space<vmem>>, vector<128x128xf32>
      %37 = arith.mulf %36, %36 : vector<128x128xf32>
      %38 = vector.shape_cast %35 : vector<1x128xf32> to vector<1x128xf32>
      %39 = vector.broadcast %38 : vector<1x128xf32> to vector<8x128xf32>
      %cst_20 = arith.constant dense<0.000000e+00> : vector<8x128xf32>
      %40 = tpu.matmul %39, %37, %cst_20 {dimension_numbers = #tpu.dot_dimension_numbers<[1], [0], [0], [1], [0, 0, 1, 1], [], []>} : vector<8x128xf32>, vector<128x128xf32>, vector<8x128xf32> -> vector<8x128xf32>
      %41 = vector.extract_strided_slice %40 {offsets = [0, 0], sizes = [1, 128], strides = [1, 1]} : vector<8x128xf32> to vector<1x128xf32>
      %42 = arith.mulf %41, %35 : vector<1x128xf32>
      %43 = vector.shape_cast %42 : vector<1x128xf32> to vector<1x1x128xf32>
      %cst_21 = arith.constant dense<0.000000e+00> : vector<1xf32>
      %44 = vector.multi_reduction <add>, %43, %cst_21 [1, 2] : vector<1x1x128xf32> to vector<1xf32>
      %45 = vector.shape_cast %44 : vector<1xf32> to vector<1x1x1xf32>
      %46 = vector.extract %45[0, 0, 0] : f32 from vector<1x1x1xf32>
      %47 = arith.mulf %29, %35 : vector<1x128xf32>
      %48 = arith.mulf %47, %47 : vector<1x128xf32>
      %49 = vector.shape_cast %48 : vector<1x128xf32> to vector<1x1x128xf32>
      %cst_22 = arith.constant dense<0.000000e+00> : vector<1xf32>
      %50 = vector.multi_reduction <add>, %49, %cst_22 [1, 2] : vector<1x1x128xf32> to vector<1xf32>
      %51 = vector.shape_cast %50 : vector<1xf32> to vector<1x1x1xf32>
      %52 = vector.extract %51[0, 0, 0] : f32 from vector<1x1x1xf32>
      %53 = arith.subf %46, %52 : f32
      %cst_23 = arith.constant 0.000000e+00 : f32
      %54 = arith.maximumf %53, %cst_23 : f32
      %55 = arith.mulf %28, %28 : f32
      %cst_24 = arith.constant 3.200000e+01 : f32
      %56 = arith.mulf %55, %cst_24 : f32
      %57 = arith.divf %54, %56 : f32
      %cst_25 = arith.constant 1.500000e+00 : f32
      %58 = arith.cmpf ogt, %26, %cst_25 : f32
      %cst_26 = arith.constant 0.000000e+00 : f32
      %59 = arith.select %58, %57, %cst_26 : f32
      %60 = vector.broadcast %59 : f32 to vector<1x128xf32>
      %c0_27 = arith.constant 0 : index
      %c0_28 = arith.constant 0 : index
      %61 = vector.load %arg6[%c0_27, %c0_28] : memref<1x128xf32, #tpu.memory_space<vmem>>, vector<1x128xf32>
      tpu.vector_store %arg6[%c0_27, %c0_28], %60 {strides = array<i32>} : memref<1x128xf32, #tpu.memory_space<vmem>>, vector<1x128xf32>,
    } else {
    }
    return
  }
  func.func @transform_0(%arg0: i32, %arg1: memref<4xi32, #tpu.memory_space<smem>>, %arg2: memref<4xi32, #tpu.memory_space<smem>>, %arg3: memref<4xi32, #tpu.memory_space<smem>>, %arg4: memref<3xi32, #tpu.memory_space<smem>>) -> (i32, i32) {
    %c0_i32 = arith.constant 0 : i32
    %c0_i32_0 = arith.constant 0 : i32
    return %arg0, %c0_i32 : i32, i32
  }
  func.func @transform_1(%arg0: i32, %arg1: memref<4xi32, #tpu.memory_space<smem>>, %arg2: memref<4xi32, #tpu.memory_space<smem>>, %arg3: memref<4xi32, #tpu.memory_space<smem>>, %arg4: memref<3xi32, #tpu.memory_space<smem>>) -> (i32, i32) {
    %0 = arith.index_cast %arg0 : i32 to index
    %1 = memref.load %arg1[%0] : memref<4xi32, #tpu.memory_space<smem>>
    %c0_i32 = arith.constant 0 : i32
    %c0_i32_0 = arith.constant 0 : i32
    return %c0_i32, %1 : i32, i32
  }
}

</mosaic_0001>

<llo_original>
// kernel: custom-call.1
$region0: #{custom-call.1}
  %s0 = inlined_call_operand.vmem [shape: u32[4], index: 0, kind: output, shape index: {}]

// kernel: sub.11
$region0: #{sub.11}
  #allocation0 [shape = 's32[1]{0}', space=sflag, size = 0x4, scoped, tag = 'scoped memory for sub.11']
  %s0 = inlined_call_operand.vmem [shape: f32[16,32], index: 0, kind: input, shape index: {}]
  %s1 = inlined_call_operand.vmem [shape: f32[16,32], index: 1, kind: input, shape index: {}]
  %s2 = inlined_call_operand.vmem [shape: f32[16,32], index: 2, kind: output, shape index: {}]
  %v3 = vld [vmem:[%s0] sm:$0xff]
  %v4 = vld [vmem:[%s1] sm:$0xff]
  %5 = xla_tuple %v3, %v4
  %6 = xla_tuple %5
  %v7 = vsub.f32 %v3, %v4
  %8 = xla_tuple %v7
  %9 = vst [vmem:[%s2] sm:$0xff] %v7
  %s10 = scalar_lea.vmem %s0, 8
  %v11 = vld [vmem:[%s10] sm:$0xff]
  %s12 = scalar_lea.vmem %s1, 8
  %v13 = vld [vmem:[%s12] sm:$0xff]
  %14 = xla_tuple %v11, %v13
  %15 = xla_tuple %14
  %v16 = vsub.f32 %v11, %v13
  %17 = xla_tuple %v16
  %s18 = scalar_lea.vmem %s2, 8
  %19 = vst [vmem:[%s18] sm:$0xff] %v16

// kernel: vicreg_cluster_loss.1
$region0: #{vicreg_cluster_loss.1}
  #allocation0 [shape = 'u32[]', space=smem, size = 0x4, offset = 0x4, fixed_abs, tag = 'smem constant byte address 0x4 - core index']
  #allocation1 [shape = 'u32[144,128]{1,0:T(1,128)}', space=vmem, size = 0x12000, scoped, tag = 'internal scratch']
  #allocation2 [shape = 'f32[128,128]{1,0:T(8,128)}', space=vmem, size = 0x10000, scoped, tag = 'scratch operand']
  #allocation3 [shape = 'f32[1,128]{1,0:T(1,128)}', space=vmem, size = 0x200, scoped, tag = 'scratch operand']
  #allocation4 [shape = 's32[1]{0}', space=sflag, size = 0x4, scoped, tag = 'scoped memory for vicreg_cluster_loss.1']
  #allocation5 [shape = 'u8[512]{0}', space=smem, size = 0x200, scoped, tag = 'prefetched SMEM operand 0']
  #allocation6 [shape = 'u8[512]{0}', space=smem, size = 0x200, scoped, tag = 'prefetched SMEM operand 1']
  #allocation7 [shape = 'u8[512]{0}', space=smem, size = 0x200, scoped, tag = 'prefetched SMEM operand 2']
  #allocation8 [shape = 'u8[512]{0}', space=smem, size = 0x200, scoped, tag = 'prefetched SMEM operand 3']
  %s0 = inlined_call_operand.vmem [shape: s32[4], index: 0, kind: input, shape index: {}]
  %s1 = inlined_call_operand.vmem [shape: s32[4], index: 1, kind: input, shape index: {}]
  %s2 = inlined_call_operand.vmem [shape: s32[4], index: 2, kind: input, shape index: {}]
  %s3 = inlined_call_operand.vmem [shape: s32[3], index: 3, kind: input, shape index: {}]
  %s4 = inlined_call_operand.vmem [shape: f32[64,128], index: 4, kind: input, shape index: {}]
  %s5 = inlined_call_operand.vmem [shape: f32[1,384], index: 5, kind: output, shape index: {}]
  %s6 = sld [smem:[#allocation0]]
  $region45: #{vicreg_cluster_loss.1} parent=0
    _
  %s8 = ssub.s32 1, %s6
  %s9 = scalar_select 0, %s8, %s6
  %s10 = sshll.u32 %s0, 4
  %s11 = int_to_ptr.vmem [resolvable:$true] %s10
  %13 = dma.vmem_to_smem %s11, 16, [#allocation5], [#allocation4]
  %s14 = sshll.u32 %s1, 4
  %s15 = int_to_ptr.vmem [resolvable:$true] %s14
  %17 = dma.vmem_to_smem %s15, 16, [#allocation6], [#allocation4]
  %s18 = sshll.u32 %s2, 4
  %s19 = int_to_ptr.vmem [resolvable:$true] %s18
  %21 = dma.vmem_to_smem %s19, 16, [#allocation7], [#allocation4]
  %s22 = sshll.u32 %s3, 4
  %s23 = int_to_ptr.vmem [resolvable:$true] %s22
  %25 = dma.vmem_to_smem %s23, 16, [#allocation8], [#allocation4]
  %26 = dma.done [#allocation4], 64
  %27 = sfence
  loop: start=0, step=1, limit=6
  $region2: #{vicreg_cluster_loss.1} parent=0 // loop_pre_header
    _
  $region3: #{vicreg_cluster_loss.1} parent=0 // loop_header
    %s29 = sphi 0, %s33
    %p30 = scmp.ge.s32.totalorder %s29, 6
    %s39 = sphi 0, %s41
    %s42 = sphi 0, %s39
    %s43 = sphi 0, %s42
    %s59 = sphi 0, %s43
    %s67 = sphi 0, %s69
    %s70 = sphi 0, %s67
    %s71 = sphi 0, %s70
    %s87 = sphi 0, %s71
  $region4: #{vicreg_cluster_loss.1} parent=0 // loop_header_branch
    %32 = sbr.rel (%p30) target = $region8
  $region5: #{vicreg_cluster_loss.1} parent=0 // loop_body
    %s34 = ssub.s32 %s29, 1
    %s35 = ssub.s32 %s29, 2
    %s36 = sadd.s32 %s29, 1
    %s37 = ssub.s32 %s29, %s36
    %p38 = scmp.eq.s32.totalorder %s37, 0
    %s40 = sadd.s32 %s39, 1
    %s41 = scalar_select %p38, %s39, %s40
    %p44 = pneg %p38
    %p45 = scmp.eq.s32.totalorder %s29, 3
    %p46 = por %p44, %p45
    %p47 = scmp.ne.s32.totalorder %s39, %s42
    %p48 = scmp.eq.s32.totalorder %s29, 0
    %p49 = por %p47, %p48
    %p50 = scmp.ne.s32.totalorder %s39, %s42
    %p51 = scmp.eq.s32.totalorder %s34, 3
    %p52 = por %p50, %p51
    %p53 = scmp.ne.s32.totalorder %s42, %s43
    %p54 = scmp.eq.s32.totalorder %s34, 0
    %p55 = por %p53, %p54
    %p56 = scmp.ne.s32.totalorder %s42, %s43
    %p57 = scmp.eq.s32.totalorder %s35, 3
    %p58 = por %p56, %p57
    %p60 = scmp.ne.s32.totalorder %s43, %s59
    %p61 = scmp.eq.s32.totalorder %s35, 0
    %p62 = por %p60, %p61
    %s63 = sld [smem:[#allocation5 + %s29]]
    %s64 = sld [smem:[#allocation5 + %s36]]
    %s65 = ssub.s32 %s63, %s64
    %p66 = scmp.eq.s32.totalorder %s65, 0
    %s68 = sadd.s32 %s67, 1
    %s69 = scalar_select %p66, %s67, %s68
    %p72 = pneg %p66
    %p73 = scmp.eq.s32.totalorder %s29, 3
    %p74 = por %p72, %p73
    %p75 = scmp.ne.s32.totalorder %s67, %s70
    %p76 = scmp.eq.s32.totalorder %s29, 0
    %p77 = por %p75, %p76
    %p78 = scmp.ne.s32.totalorder %s67, %s70
    %p79 = scmp.eq.s32.totalorder %s34, 3
    %p80 = por %p78, %p79
    %p81 = scmp.ne.s32.totalorder %s70, %s71
    %p82 = scmp.eq.s32.totalorder %s34, 0
    %p83 = por %p81, %p82
    %p84 = scmp.ne.s32.totalorder %s70, %s71
    %p85 = scmp.eq.s32.totalorder %s35, 3
    %p86 = por %p84, %p85
    %p88 = scmp.ne.s32.totalorder %s71, %s87
    %p89 = scmp.eq.s32.totalorder %s35, 0
    %p90 = por %p88, %p89
    %p91 = scmp.le.s32.totalorder 1, %s29
    %p92 = scmp.lt.s32.totalorder %s29, 5
    %p93 = pnand %p91, %p92
    %p94 = pneg %p93
    // Predicated region
    $region9: #{vicreg_cluster_loss.1} parent=5 // pred_check
      _
    $region10: #{vicreg_cluster_loss.1} parent=5 // pred_check_branch
      %96 = sbr.rel (%p93) target = $region12
    $region11: #{vicreg_cluster_loss.1} parent=5 // pred_region
      %s97 = ssub.s32 %s29, 1
    $region12: #{vicreg_cluster_loss.1} parent=5 // pred_fallthru
      _
    %p98 = scmp.lt.s32.totalorder %s29, 4
    // Predicated region
    $region13: #{vicreg_cluster_loss.1} parent=5 // pred_check
      %p99 = pneg %p98
    $region14: #{vicreg_cluster_loss.1} parent=5 // pred_check_branch
      %101 = sbr.rel (%p99) target = $region16
    $region15: #{vicreg_cluster_loss.1} parent=5 // pred_region
      // Predicated region
      $region17: #{vicreg_cluster_loss.1} parent=15 // pred_check
        %p102 = pneg %p49
      $region18: #{vicreg_cluster_loss.1} parent=15 // pred_check_branch
        %104 = sbr.rel (%p102) target = $region20
      $region19: #{vicreg_cluster_loss.1} parent=15 // pred_region
        %s105 = smul.u32 2, %s29
        %p106 = scmp.lt.s32.totalorder %s105, 7
        %s107 = scalar_select %p106, %s105, 7
        %s108 = smul.addr %s107, 8
        %s109 = scalar_lea.vmem %s4, %s108
        %s110 = smul.u32 2, %s29
      $region20: #{vicreg_cluster_loss.1} parent=15 // pred_fallthru
        _
    $region16: #{vicreg_cluster_loss.1} parent=5 // pred_fallthru
      _
    %p111 = scmp.le.s32.totalorder 1, %s29
    %p112 = scmp.lt.s32.totalorder %s29, 5
    %p113 = pnand %p111, %p112
    %p114 = pneg %p113
    // Predicated region
    $region21: #{vicreg_cluster_loss.1} parent=5 // pred_check
      _
    $region22: #{vicreg_cluster_loss.1} parent=5 // pred_check_branch
      %116 = sbr.rel (%p113) target = $region24
    $region23: #{vicreg_cluster_loss.1} parent=5 // pred_region
      %s117 = ssub.s32 %s29, 1
      %s118 = smul.u32 2, %s34
      %p119 = scmp.lt.s32.totalorder %s118, 7
      %s120 = scalar_select %p119, %s118, 7
      %s121 = smul.addr %s120, 8
      %s122 = scalar_lea.vmem %s4, %s121
      %p123 = pneg %p55
      %p124 = pneg %p52
      %p125 = pneg %p83
      %p126 = pneg %p80
      %s127 = sld [smem:[#allocation5 + %s34]]
      %p128 = scmp.lt.s32.totalorder %s127, 2
      %s129 = scalar_select %p128, %s127, 2
      %s130 = scalar_lea.vmem %s5, %s129
      %s131 = smul.u32 2, %s34
      %p132 = scmp.lt.s32.totalorder %s131, 7
      %s133 = scalar_select %p132, %s131, 7
      %s134 = smul.addr %s133, 8
      %s135 = scalar_lea.vmem %s4, %s134
      %s136 = smul.u32 2, %s34
      %s137 = sld [smem:[#allocation5 + %s34]]
      %p138 = scmp.lt.s32.totalorder %s137, 2
      %s139 = scalar_select %p138, %s137, 2
      %s140 = scalar_lea.vmem %s5, %s139
      %s141 = sld [smem:[#allocation5 + %s34]]
      %s143 = sld [smem:[#allocation6 + %s34]]
      %p144 = scmp.eq.s32.totalorder %s143, 1
      // Predicated region
      $region25: #{vicreg_cluster_loss.1} parent=23 // pred_check
        %p145 = pneg %p144
      $region26: #{vicreg_cluster_loss.1} parent=23 // pred_check_branch
        %147 = sbr.rel (%p145) target = $region28
      $region27: #{vicreg_cluster_loss.1} parent=23 // pred_region
        %148 = vst [vmem:[#allocation2] sm:$0xff] 0.0
        %149 = vst [vmem:[#allocation2 + $0x8] sm:$0xff] 0.0
        %150 = vst [vmem:[#allocation2 + $0x10] sm:$0xff] 0.0
        %151 = vst [vmem:[#allocation2 + $0x18] sm:$0xff] 0.0
        %152 = vst [vmem:[#allocation2 + $0x20] sm:$0xff] 0.0
        %153 = vst [vmem:[#allocation2 + $0x28] sm:$0xff] 0.0
        %154 = vst [vmem:[#allocation2 + $0x30] sm:$0xff] 0.0
        %155 = vst [vmem:[#allocation2 + $0x38] sm:$0xff] 0.0
        %156 = vst [vmem:[#allocation2 + $0x40] sm:$0xff] 0.0
        %157 = vst [vmem:[#allocation2 + $0x48] sm:$0xff] 0.0
        %158 = vst [vmem:[#allocation2 + $0x50] sm:$0xff] 0.0
        %159 = vst [vmem:[#allocation2 + $0x58] sm:$0xff] 0.0
        %160 = vst [vmem:[#allocation2 + $0x60] sm:$0xff] 0.0
        %161 = vst [vmem:[#allocation2 + $0x68] sm:$0xff] 0.0
        %162 = vst [vmem:[#allocation2 + $0x70] sm:$0xff] 0.0
        %163 = vst [vmem:[#allocation2 + $0x78] sm:$0xff] 0.0
        %164 = vst [vmem:[#allocation3] sm:$0x1] 0.0
      $region28: #{vicreg_cluster_loss.1} parent=23 // pred_fallthru
        _
      %v165 = vld [vmem:[%s135] sm:$0xff]
      %v166 = vld [vmem:[%s135 + $0x8] sm:$0xff]
      %v167 = vld [vmem:[#allocation3] sm:$0x1]
      %v168 = vmul.f32 %v165, %v165
      %v169 = vmul.f32 %v166, %v166
      %v170 = vadd.f32 %v168, %v169
      %v171 = vrot.slane %v170, 4
      %v172 = vadd.f32 %v170, %v171
      %v173 = vrot.slane %v172, 2
      %v174 = vadd.f32 %v172, %v173
      %v175 = vrot.slane %v174, 1
      %v176 = vadd.f32 %v174, %v175
      %v177 = vadd.f32 %v167, %v176
      %178 = vst [vmem:[#allocation3] sm:$0x1] %v177
      %v179 = vpack.c.bf16 %v166, %v165
      %v180 = vld [vmem:[#allocation2] sm:$0xff]
      %v181 = vld [vmem:[#allocation2 + $0x8] sm:$0xff]
      %v182 = vld [vmem:[#allocation2 + $0x10] sm:$0xff]
      %v183 = vld [vmem:[#allocation2 + $0x18] sm:$0xff]
      %v184 = vld [vmem:[#allocation2 + $0x20] sm:$0xff]
      %v185 = vld [vmem:[#allocation2 + $0x28] sm:$0xff]
      %v186 = vld [vmem:[#allocation2 + $0x30] sm:$0xff]
      %v187 = vld [vmem:[#allocation2 + $0x38] sm:$0xff]
      %v188 = vld [vmem:[#allocation2 + $0x40] sm:$0xff]
      %v189 = vld [vmem:[#allocation2 + $0x48] sm:$0xff]
      %v190 = vld [vmem:[#allocation2 + $0x50] sm:$0xff]
      %v191 = vld [vmem:[#allocation2 + $0x58] sm:$0xff]
      %v192 = vld [vmem:[#allocation2 + $0x60] sm:$0xff]
      %v193 = vld [vmem:[#allocation2 + $0x68] sm:$0xff]
      %v194 = vld [vmem:[#allocation2 + $0x70] sm:$0xff]
      %v195 = vld [vmem:[#allocation2 + $0x78] sm:$0xff]
      %196 = vxpose.xlu0.c.b16.start [1/8] %v179, 128
      %197 = vxpose.xlu0.c.b16.cont [2/8] 0, 128
      %198 = vxpose.xlu0.c.b16.cont [3/8] 0, 128
      %199 = vxpose.xlu0.c.b16.cont [4/8] 0, 128
      %200 = vxpose.xlu0.c.b16.cont [5/8] 0, 128
      %201 = vxpose.xlu0.c.b16.cont [6/8] 0, 128
      %202 = vxpose.xlu0.c.b16.cont [7/8] 0, 128
      %203 = vxpose.xlu0.c.b16.end [8/8] 0, 128
      %v204 = vpop.trf.xlu0
      %v205 = vpop.trf.xlu0
      %v206 = vpop.trf.xlu0
      %v207 = vpop.trf.xlu0
      %v208 = vpop.trf.xlu0
      %v209 = vpop.trf.xlu0
      %v210 = vpop.trf.xlu0
      %v211 = vpop.trf.xlu0
      %vm212 = vcmask 130048
      %v214 = vsel %vm212, %v204, 0
      %v217 = vsel %vm212, %v205, 0
      %v220 = vsel %vm212, %v206, 0
      %v223 = vsel %vm212, %v207, 0
      %v226 = vsel %vm212, %v208, 0
      %v229 = vsel %vm212, %v209, 0
      %v232 = vsel %vm212, %v210, 0
      %v235 = vsel %vm212, %v211, 0
      %237 = vmatprep.subr.bf16.mxu0 0
      %238 = vmatpush1.bf16.msra.mxu0 0
      %239 = vmatprep.subr.bf16.mxu0 0
      %240 = vmatpush1.bf16.msra.mxu0 0
      %241 = vmatprep.subr.bf16.mxu0 0
      %242 = vmatpush1.bf16.msra.mxu0 0
      %243 = vmatprep.subr.bf16.mxu0 0
      %244 = vmatpush1.bf16.msra.mxu0 0
      %245 = vmatprep.subr.bf16.mxu0 0
      %246 = vmatpush1.bf16.msra.mxu0 0
      %247 = vmatprep.subr.bf16.mxu0 0
      %248 = vmatpush1.bf16.msra.mxu0 0
      %249 = vmatprep.subr.bf16.mxu0 0
      %250 = vmatpush1.bf16.msra.mxu0 0
      %251 = vmatprep.subr.bf16.mxu0 0
      %252 = vmatpush1.bf16.msra.mxu0 %v179
      %253 = vmatprep.subr.bf16.mxu0 0
      %254 = vmatpush2.bf16.msra.mxu0 0
      %255 = vmatprep.subr.bf16.mxu0 0
      %256 = vmatpush2.bf16.msra.mxu0 0
      %257 = vmatprep.subr.bf16.mxu0 0
      %258 = vmatpush2.bf16.msra.mxu0 0
      %259 = vmatprep.subr.bf16.mxu0 0
      %260 = vmatpush2.bf16.msra.mxu0 0
      %261 = vmatprep.subr.bf16.mxu0 0
      %262 = vmatpush2.bf16.msra.mxu0 0
      %263 = vmatprep.subr.bf16.mxu0 0
      %264 = vmatpush2.bf16.msra.mxu0 0
      %265 = vmatprep.subr.bf16.mxu0 0
      %266 = vmatpush2.bf16.msra.mxu0 0
      %267 = vmatprep.subr.bf16.mxu0 0
      %268 = vmatpush2.bf16.msra.mxu0 0
      %269 = vmatprep.mubr.bf16.mxu0 0
      %270 = vmatmul.mubr.bf16.gmra.mxu0 %v214
      %v271 = vpop.f32.mrf.mxu0
      %v272 = vadd.f32 0.0, %v271
      %v273 = vpop.f32.mrf.mxu0
      %v274 = vpop.f32.mrf.mxu0
      %v275 = vadd.f32 0.0, %v274
      %v276 = vpop.f32.mrf.mxu0
      %277 = vmatprep.mubr.bf16.mxu0 0
      %278 = vmatmul.mubr.bf16.gmra.mxu0 %v217
      %v279 = vpop.f32.mrf.mxu0
      %v280 = vadd.f32 0.0, %v279
      %v281 = vpop.f32.mrf.mxu0
      %v282 = vpop.f32.mrf.mxu0
      %v283 = vadd.f32 0.0, %v282
      %v284 = vpop.f32.mrf.mxu0
      %285 = vmatprep.mubr.bf16.mxu0 0
      %286 = vmatmul.mubr.bf16.gmra.mxu0 %v220
      %v287 = vpop.f32.mrf.mxu0
      %v288 = vadd.f32 0.0, %v287
      %v289 = vpop.f32.mrf.mxu0
      %v290 = vpop.f32.mrf.mxu0
      %v291 = vadd.f32 0.0, %v290
      %v292 = vpop.f32.mrf.mxu0
      %293 = vmatprep.mubr.bf16.mxu0 0
      %294 = vmatmul.mubr.bf16.gmra.mxu0 %v223
      %v295 = vpop.f32.mrf.mxu0
      %v296 = vadd.f32 0.0, %v295
      %v297 = vpop.f32.mrf.mxu0
      %v298 = vpop.f32.mrf.mxu0
      %v299 = vadd.f32 0.0, %v298
      %v300 = vpop.f32.mrf.mxu0
      %301 = vmatprep.mubr.bf16.mxu0 0
      %302 = vmatmul.mubr.bf16.gmra.mxu0 %v226
      %v303 = vpop.f32.mrf.mxu0
      %v304 = vadd.f32 0.0, %v303
      %v305 = vpop.f32.mrf.mxu0
      %v306 = vpop.f32.mrf.mxu0
      %v307 = vadd.f32 0.0, %v306
      %v308 = vpop.f32.mrf.mxu0
      %309 = vmatprep.mubr.bf16.mxu0 0
      %310 = vmatmul.mubr.bf16.gmra.mxu0 %v229
      %v311 = vpop.f32.mrf.mxu0
      %v312 = vadd.f32 0.0, %v311
      %v313 = vpop.f32.mrf.mxu0
      %v314 = vpop.f32.mrf.mxu0
      %v315 = vadd.f32 0.0, %v314
      %v316 = vpop.f32.mrf.mxu0
      %317 = vmatprep.mubr.bf16.mxu0 0
      %318 = vmatmul.mubr.bf16.gmra.mxu0 %v232
      %v319 = vpop.f32.mrf.mxu0
      %v320 = vadd.f32 0.0, %v319
      %v321 = vpop.f32.mrf.mxu0
      %v322 = vpop.f32.mrf.mxu0
      %v323 = vadd.f32 0.0, %v322
      %v324 = vpop.f32.mrf.mxu0
      %325 = vmatprep.mubr.bf16.mxu0 0
      %326 = vmatmul.mubr.bf16.gmra.mxu0 %v235
      %v327 = vpop.f32.mrf.mxu0
      %v328 = vadd.f32 0.0, %v327
      %v329 = vpop.f32.mrf.mxu0
      %v330 = vpop.f32.mrf.mxu0
      %v331 = vadd.f32 0.0, %v330
      %v332 = vpop.f32.mrf.mxu0
      %333 = vdwg.mxu0
      %v334 = vadd.f32 %v180, %v272
      %v335 = vadd.f32 %v181, %v275
      %v336 = vadd.f32 %v182, %v280
      %v337 = vadd.f32 %v183, %v283
      %v338 = vadd.f32 %v184, %v288
      %v339 = vadd.f32 %v185, %v291
      %v340 = vadd.f32 %v186, %v296
      %v341 = vadd.f32 %v187, %v299
      %v342 = vadd.f32 %v188, %v304
      %v343 = vadd.f32 %v189, %v307
      %v344 = vadd.f32 %v190, %v312
      %v345 = vadd.f32 %v191, %v315
      %v346 = vadd.f32 %v192, %v320
      %v347 = vadd.f32 %v193, %v323
      %v348 = vadd.f32 %v194, %v328
      %v349 = vadd.f32 %v195, %v331
      %350 = vst [vmem:[#allocation2] sm:$0xff] %v334
      %351 = vst [vmem:[#allocation2 + $0x8] sm:$0xff] %v335
      %352 = vst [vmem:[#allocation2 + $0x10] sm:$0xff] %v336
      %353 = vst [vmem:[#allocation2 + $0x18] sm:$0xff] %v337
      %354 = vst [vmem:[#allocation2 + $0x20] sm:$0xff] %v338
      %355 = vst [vmem:[#allocation2 + $0x28] sm:$0xff] %v339
      %356 = vst [vmem:[#allocation2 + $0x30] sm:$0xff] %v340
      %357 = vst [vmem:[#allocation2 + $0x38] sm:$0xff] %v341
      %358 = vst [vmem:[#allocation2 + $0x40] sm:$0xff] %v342
      %359 = vst [vmem:[#allocation2 + $0x48] sm:$0xff] %v343
      %360 = vst [vmem:[#allocation2 + $0x50] sm:$0xff] %v344
      %361 = vst [vmem:[#allocation2 + $0x58] sm:$0xff] %v345
      %362 = vst [vmem:[#allocation2 + $0x60] sm:$0xff] %v346
      %363 = vst [vmem:[#allocation2 + $0x68] sm:$0xff] %v347
      %364 = vst [vmem:[#allocation2 + $0x70] sm:$0xff] %v348
      %365 = vst [vmem:[#allocation2 + $0x78] sm:$0xff] %v349
      %s366 = sld [smem:[#allocation7 + %s34]]
      %p367 = scmp.eq.s32.totalorder %s366, 1
      // Predicated region
      $region29: #{vicreg_cluster_loss.1} parent=23 // pred_check
        %p368 = pneg %p367
      $region30: #{vicreg_cluster_loss.1} parent=23 // pred_check_branch
        %370 = sbr.rel (%p368) target = $region32
      $region31: #{vicreg_cluster_loss.1} parent=23 // pred_region
        %s371 = sld [smem:[#allocation5 + %s34]]
        %s372 = sld [smem:[#allocation8 + %s371]]
        %s373 = scvt.s32.f32 %s372
        %s374 = ssub.f32 %s373, 1.0
        %s375 = smax.f32 %s374, 1.0
        %v376 = vld [vmem:[#allocation3] sm:$0x1]
        %v377 = vstv %s375
        %v378 = vrcp.pop %v377
        %v379 = vmul.f32 %v376, %v378
        %v380 = vadd.f32 %v379, 0.0001
        %v381 = vrcp.pop %v380
        %v382 = vmul.f32 1.0, %v381
        %v383 = vld [vmem:[#allocation2] sm:$0xff]
        %v384 = vld [vmem:[#allocation2 + $0x8] sm:$0xff]
        %v385 = vld [vmem:[#allocation2 + $0x10] sm:$0xff]
        %v386 = vld [vmem:[#allocation2 + $0x18] sm:$0xff]
        %v387 = vld [vmem:[#allocation2 + $0x20] sm:$0xff]
        %v388 = vld [vmem:[#allocation2 + $0x28] sm:$0xff]
        %v389 = vld [vmem:[#allocation2 + $0x30] sm:$0xff]
        %v390 = vld [vmem:[#allocation2 + $0x38] sm:$0xff]
        %v391 = vld [vmem:[#allocation2 + $0x40] sm:$0xff]
        %v392 = vld [vmem:[#allocation2 + $0x48] sm:$0xff]
        %v393 = vld [vmem:[#allocation2 + $0x50] sm:$0xff]
        %v394 = vld [vmem:[#allocation2 + $0x58] sm:$0xff]
        %v395 = vld [vmem:[#allocation2 + $0x60] sm:$0xff]
        %v396 = vld [vmem:[#allocation2 + $0x68] sm:$0xff]
        %v397 = vld [vmem:[#allocation2 + $0x70] sm:$0xff]
        %v398 = vld [vmem:[#allocation2 + $0x78] sm:$0xff]
        %v399 = vmul.f32 %v383, %v383
        %v400 = vmul.f32 %v384, %v384
        %v401 = vmul.f32 %v385, %v385
        %v402 = vmul.f32 %v386, %v386
        %v403 = vmul.f32 %v387, %v387
        %v404 = vmul.f32 %v388, %v388
        %v405 = vmul.f32 %v389, %v389
        %v406 = vmul.f32 %v390, %v390
        %v407 = vmul.f32 %v391, %v391
        %v408 = vmul.f32 %v392, %v392
        %v409 = vmul.f32 %v393, %v393
        %v410 = vmul.f32 %v394, %v394
        %v411 = vmul.f32 %v395, %v395
        %v412 = vmul.f32 %v396, %v396
        %v413 = vmul.f32 %v397, %v397
        %v414 = vmul.f32 %v398, %v398
        %v416 = vlaneseq
        %v417 = vshrl.u32 %v416, 7
        %v418 = vsub.s32 0, %v417
        %v419 = vrot.slane %v382, %v418
        %421 = vmatprep.subr.mxu0 0.0
        %422 = vmatpush1.msra.mxu0 %v414
        %423 = vmatprep.subr.mxu0 0.0
        %424 = vmatpush1.msra.mxu0 %v413
        %425 = vmatprep.subr.mxu0 0.0
        %426 = vmatpush1.msra.mxu0 %v412
        %427 = vmatprep.subr.mxu0 0.0
        %428 = vmatpush1.msra.mxu0 %v411
        %429 = vmatprep.subr.mxu0 0.0
        %430 = vmatpush1.msra.mxu0 %v410
        %431 = vmatprep.subr.mxu0 0.0
        %432 = vmatpush1.msra.mxu0 %v409
        %433 = vmatprep.subr.mxu0 0.0
        %434 = vmatpush1.msra.mxu0 %v408
        %435 = vmatprep.subr.mxu0 0.0
        %436 = vmatpush1.msra.mxu0 %v407
        %437 = vmatprep.subr.mxu0 0.0
        %438 = vmatpush1.msra.mxu0 %v406
        %439 = vmatprep.subr.mxu0 0.0
        %440 = vmatpush1.msra.mxu0 %v405
        %441 = vmatprep.subr.mxu0 0.0
        %442 = vmatpush1.msra.mxu0 %v404
        %443 = vmatprep.subr.mxu0 0.0
        %444 = vmatpush1.msra.mxu0 %v403
        %445 = vmatprep.subr.mxu0 0.0
        %446 = vmatpush1.msra.mxu0 %v402
        %447 = vmatprep.subr.mxu0 0.0
        %448 = vmatpush1.msra.mxu0 %v401
        %449 = vmatprep.subr.mxu0 0.0
        %450 = vmatpush1.msra.mxu0 %v400
        %451 = vmatprep.subr.mxu0 0.0
        %452 = vmatpush1.msra.mxu0 %v399
        %453 = vmatprep.subr.mxu0 0.0
        %454 = vmatpush2.msra.mxu0 0.0
        %455 = vmatprep.subr.mxu0 0.0
        %456 = vmatpush2.msra.mxu0 0.0
        %457 = vmatprep.subr.mxu0 0.0
        %458 = vmatpush2.msra.mxu0 0.0
        %459 = vmatprep.subr.mxu0 0.0
        %460 = vmatpush2.msra.mxu0 0.0
        %461 = vmatprep.subr.mxu0 0.0
        %462 = vmatpush2.msra.mxu0 0.0
        %463 = vmatprep.subr.mxu0 0.0
        %464 = vmatpush2.msra.mxu0 0.0
        %465 = vmatprep.subr.mxu0 0.0
        %466 = vmatpush2.msra.mxu0 0.0
        %467 = vmatprep.subr.mxu0 0.0
        %468 = vmatpush2.msra.mxu0 0.0
        %469 = vmatprep.subr.mxu0 0.0
        %470 = vmatpush2.msra.mxu0 0.0
        %471 = vmatprep.subr.mxu0 0.0
        %472 = vmatpush2.msra.mxu0 0.0
        %473 = vmatprep.subr.mxu0 0.0
        %474 = vmatpush2.msra.mxu0 0.0
        %475 = vmatprep.subr.mxu0 0.0
        %476 = vmatpush2.msra.mxu0 0.0
        %477 = vmatprep.subr.mxu0 0.0
        %478 = vmatpush2.msra.mxu0 0.0
        %479 = vmatprep.subr.mxu0 0.0
        %480 = vmatpush2.msra.mxu0 0.0
        %481 = vmatprep.subr.mxu0 0.0
        %482 = vmatpush2.msra.mxu0 0.0
        %483 = vmatprep.subr.mxu0 0.0
        %484 = vmatpush2.msra.mxu0 0.0
        %485 = vmatprep.mubr.f32.mxu0 0.0
        %486 = vmatmul.mubr.f32.gmra.mxu0 %v419
        %v487 = vpop.f32.mrf.mxu0
        %v488 = vadd.f32 0.0, %v487
        %v489 = vpop.f32.mrf.mxu0
        %490 = vdwg.mxu0
        %v491 = vmul.f32 %v488, %v382
        %vm492 = vcmask 1040384
        %v493 = vsel %vm492, %v491, 0.0
        %494 = vadd.xlane.f32.xlu0 %v493
        %v495 = vpop.xlane.xlu0 %494
        %v496 = vrot.slane %v495, 4
        %v497 = vadd.f32 %v495, %v496
        %v498 = vrot.slane %v497, 2
        %v499 = vadd.f32 %v497, %v498
        %v500 = vrot.slane %v499, 1
        %v501 = vadd.f32 %v499, %v500
        %s502 = vtos %v501
        %v503 = vmul.f32 %v376, %v382
        %v504 = vmul.f32 %v503, %v503
        %v505 = vsel %vm492, %v504, 0.0
        %506 = vadd.xlane.f32.xlu0 %v505
        %v507 = vpop.xlane.xlu0 %506
        %v508 = vrot.slane %v507, 4
        %v509 = vadd.f32 %v507, %v508
        %v510 = vrot.slane %v509, 2
        %v511 = vadd.f32 %v509, %v510
        %v512 = vrot.slane %v511, 1
        %v513 = vadd.f32 %v511, %v512
        %s514 = vtos %v513
        %s515 = ssub.f32 %s502, %s514
        %s516 = smax.f32 %s515, 0.0
        %s517 = smul.f32 %s375, %s375
        %s518 = smul.f32 %s517, 32.0
        %v519 = vstv %s518
        %v520 = vrcp.pop %v519
        %s521 = vtos %v520
        %s522 = smul.f32 %s516, %s521
        %p523 = scmp.gt.s32.totalorder %s372, 1
        %s524 = scalar_select %p523, %s522, 0.0
        %v525 = vstv %s524
        %526 = vst [vmem:[%s140] sm:$0x1] %v525
      $region32: #{vicreg_cluster_loss.1} parent=23 // pred_fallthru
        _
      %s527 = sld [smem:[#allocation5 + %s34]]
      %p528 = scmp.lt.s32.totalorder %s527, 2
      %s529 = scalar_select %p528, %s527, 2
      %s530 = scalar_lea.vmem %s5, %s529
      // Predicated region
      $region33: #{vicreg_cluster_loss.1} parent=23 // pred_check
        %p531 = pneg %p80
      $region34: #{vicreg_cluster_loss.1} parent=23 // pred_check_branch
        %533 = sbr.rel (%p531) target = $region36
      $region35: #{vicreg_cluster_loss.1} parent=23 // pred_region
        %s534 = sld [smem:[#allocation5 + %s34]]
      $region36: #{vicreg_cluster_loss.1} parent=23 // pred_fallthru
        _
    $region24: #{vicreg_cluster_loss.1} parent=5 // pred_fallthru
      _
    %p535 = scmp.le.s32.totalorder 2, %s29
    // Predicated region
    $region37: #{vicreg_cluster_loss.1} parent=5 // pred_check
      %p536 = pneg %p535
    $region38: #{vicreg_cluster_loss.1} parent=5 // pred_check_branch
      %538 = sbr.rel (%p536) target = $region40
    $region39: #{vicreg_cluster_loss.1} parent=5 // pred_region
      %s539 = ssub.s32 %s29, 2
      // Predicated region
      $region41: #{vicreg_cluster_loss.1} parent=39 // pred_check
        %p540 = pneg %p86
      $region42: #{vicreg_cluster_loss.1} parent=39 // pred_check_branch
        %542 = sbr.rel (%p540) target = $region44
      $region43: #{vicreg_cluster_loss.1} parent=39 // pred_region
        %s543 = sld [smem:[#allocation5 + %s35]]
        %p544 = scmp.lt.s32.totalorder %s543, 2
        %s545 = scalar_select %p544, %s543, 2
        %s546 = scalar_lea.vmem %s5, %s545
      $region44: #{vicreg_cluster_loss.1} parent=39 // pred_fallthru
        _
    $region40: #{vicreg_cluster_loss.1} parent=5 // pred_fallthru
      _
  $region6: #{vicreg_cluster_loss.1} parent=0 // loop_footer
    %s33 = sadd.s32 1, %s29
  $region7: #{vicreg_cluster_loss.1} parent=0 // loop_footer_branch
    %28 = sbr.rel target = $region3
  $region8: #{vicreg_cluster_loss.1} parent=0 // loop_exit
    _

</llo_original>
